<compile_context>
chip_gen: v7x
topology: tpu7x:2x2x1
jax: 0.10.0
libtpu: 0.0.40
codegen_flags: <defaults>
</compile_context>

<pallas_src>
import functools
import math

import jax
import jax.numpy as jnp
from jax.experimental import pallas as pl
from jax.experimental.pallas import tpu as pltpu


_LANES = 128
_MAX_BLOCK_ROWS = 512   # sublane rows per block (512*128 boxes / block)


# ----------------------------------------------------------------------------
# atan is not guaranteed to have a Mosaic lowering, so we use the Cephes
# float32 atanf approximation (~1 ulp in f32) built from supported VPU ops.
# ----------------------------------------------------------------------------
def _atan_f32(x):
    tan3pi8 = 2.414213562373095    # tan(3*pi/8)
    tanpi8 = 0.4142135623730950    # tan(pi/8)
    pio2 = 1.5707963267948966
    pio4 = 0.7853981633974483

    ax = jnp.abs(x)
    big = ax > tan3pi8
    mid = jnp.logical_and(ax > tanpi8, jnp.logical_not(big))

    safe_ax = jnp.maximum(ax, 1e-30)
    z = jnp.where(big, -1.0 / safe_ax,
                  jnp.where(mid, (ax - 1.0) / (ax + 1.0), ax))
    y0 = jnp.where(big, pio2, jnp.where(mid, pio4, 0.0))

    zz = z * z
    poly = (((8.05374449538e-2 * zz - 1.38776856032e-1) * zz
             + 1.99777106478e-1) * zz - 3.33329491539e-1) * zz * z + z
    res = y0 + poly
    return jnp.where(x < 0.0, -res, res)


# ----------------------------------------------------------------------------
# Pallas kernel: per-box CIoU loss on dense (block_rows, 128) coordinate
# planes.  pred_ref/target_ref: (4, block_rows, 128); loss_ref: (block_rows,128)
# ----------------------------------------------------------------------------
def _ciou_kernel(pred_ref, target_ref, loss_ref, *, eps):
    b1_x1 = pred_ref[0]      # each (block_rows, 128), dense vregs
    b1_y1 = pred_ref[1]
    b1_x2 = pred_ref[2]
    b1_y2 = pred_ref[3]
    b2_x1 = target_ref[0]
    b2_y1 = target_ref[1]
    b2_x2 = target_ref[2]
    b2_y2 = target_ref[3]

    # Intersection
    wh_x = jnp.maximum(jnp.minimum(b1_x2, b2_x2) - jnp.maximum(b1_x1, b2_x1), 0.0)
    wh_y = jnp.maximum(jnp.minimum(b1_y2, b2_y2) - jnp.maximum(b1_y1, b2_y1), 0.0)
    overlap = wh_x * wh_y

    # Widths / heights (reused for union and aspect-ratio term)
    w1 = b1_x2 - b1_x1
    h1 = b1_y2 - b1_y1
    w2 = b2_x2 - b2_x1
    h2 = b2_y2 - b2_y1

    # Union / IoU (exact division: IoU is the most error-sensitive term)
    union = w1 * h1 + w2 * h2 - overlap + eps
    ious = overlap / union

    # Enclosing box diagonal
    cw = jnp.maximum(jnp.maximum(b1_x2, b2_x2) - jnp.minimum(b1_x1, b2_x1), 0.0)
    ch = jnp.maximum(jnp.maximum(b1_y2, b2_y2) - jnp.minimum(b1_y1, b2_y1), 0.0)
    c2 = cw * cw + ch * ch + eps

    # Center distance (write *0.25 instead of /4)
    dx = (b2_x1 + b2_x2) - (b1_x1 + b1_x2)
    dy = (b2_y1 + b2_y2) - (b1_y1 + b1_y2)
    rho2 = 0.25 * (dx * dx + dy * dy)

    # Aspect-ratio term: fuse atan(w2/h2e)-atan(w1/h1e) into a single atan.
    # Both ratios are >= 0 for well-formed boxes so no quadrant fixup needed.
    h1e = h1 + eps
    h2e = h2 + eps
    num = w2 * h1e - w1 * h2e
    den = h1e * h2e + w1 * w2            # > 0 always
    dv = _atan_f32(num * pl.reciprocal(den, approx=True))
    v = (4.0 / (math.pi ** 2)) * dv * dv

    # Approximate reciprocals (EUP) for the remaining divides - a loss value
    # tolerates the ~2^-12 relative error easily.
    cious = ious - (rho2 * pl.reciprocal(c2, approx=True)
                    + v * v * pl.reciprocal(1.0 - ious + v, approx=True))
    loss_ref[...] = 1.0 - cious


def ciou_loss_pallas(pred, target, eps=1e-6):
    """Per-element CIoU loss. pred/target: (n, 4) -> (n,) float32."""
    n = pred.shape[0]
    rows = pl.cdiv(n, _LANES)            # rows of 128 boxes each
    npad = rows * _LANES

    def to_planes(x):
        xt = jnp.transpose(x.astype(jnp.float32))          # (4, n)
        xt = jnp.pad(xt, ((0, 0), (0, npad - n)))          # single padding pass
        return xt.reshape(4, rows, _LANES)

    p = to_planes(pred)
    t = to_planes(target)

    # Block size: full array for small inputs, otherwise 512 sublane-rows
    # (multiple of 8, ~1 MiB f32 per input block).  Non-divisible grids are
    # handled by Pallas (edge blocks are masked); padded/garbage lanes are
    # finite thanks to eps and are sliced off below.
    block_rows = min(rows, _MAX_BLOCK_ROWS)
    grid = (pl.cdiv(rows, block_rows),)

    loss2d = pl.pallas_call(
        functools.partial(_ciou_kernel, eps=eps),
        out_shape=jax.ShapeDtypeStruct((rows, _LANES), jnp.float32),
        grid=grid,
        in_specs=[
            pl.BlockSpec((4, block_rows, _LANES), lambda i: (0, i, 0)),
            pl.BlockSpec((4, block_rows, _LANES), lambda i: (0, i, 0)),
        ],
        out_specs=pl.BlockSpec((block_rows, _LANES), lambda i: (i, 0)),
        compiler_params=pltpu.CompilerParams(
            dimension_semantics=("parallel",)),
    )(p, t)

    return loss2d.reshape(npad)[:n]


# ----------------------------------------------------------------------------
# MyCIoULoss.forward equivalent (weighted_loss / weight_reduce_loss semantics)
# ----------------------------------------------------------------------------
def my_ciou_loss(pred, target, weight=None, avg_factor=None,
                 reduction_override=None, *, eps=1e-6, reduction='mean',
                 loss_weight=1.0):
    # NOTE: this data-dependent early-exit mirrors the eager PyTorch check;
    # it must be evaluated outside jax.jit (host sync) - same as the original.
    if weight is not None and not bool(jnp.any(weight > 0)):
        w = weight
        if pred.ndim == w.ndim + 1:
            w = w[:, None]
        return (pred * w).sum()

    assert reduction_override in (None, 'none', 'mean', 'sum')
    red = reduction_override if reduction_override else reduction

    loss = ciou_loss_pallas(pred, target, eps=eps)   # (n,)

    if weight is not None:
        loss = loss * weight

    if avg_factor is None:
        if red == 'mean':
            loss = jnp.mean(loss)
        elif red == 'sum':
            loss = jnp.sum(loss)
    else:
        if red == 'mean':
            loss = jnp.sum(loss) / avg_factor
        elif red != 'none':
            raise ValueError('avg_factor can not be used with reduction="sum"')

    return loss_weight * loss


# Pure-JAX reference of ciou_loss (for a light sanity check).
def _ciou_ref(pred, target, eps=1e-6):
    lt = jnp.maximum(pred[:, :2], target[:, :2])
    rb = jnp.minimum(pred[:, 2:], target[:, 2:])
    wh = jnp.maximum(rb - lt, 0.0)
    overlap = wh[:, 0] * wh[:, 1]
    ap = (pred[:, 2] - pred[:, 0]) * (pred[:, 3] - pred[:, 1])
    ag = (target[:, 2] - target[:, 0]) * (target[:, 3] - target[:, 1])
    union = ap + ag - overlap + eps
    ious = overlap / union
    enc_lt = jnp.minimum(pred[:, :2], target[:, :2])
    enc_rb = jnp.maximum(pred[:, 2:], target[:, 2:])
    enc_wh = jnp.maximum(enc_rb - enc_lt, 0.0)
    c2 = enc_wh[:, 0] ** 2 + enc_wh[:, 1] ** 2 + eps
    w1, h1 = pred[:, 2] - pred[:, 0], pred[:, 3] - pred[:, 1] + eps
    w2, h2 = target[:, 2] - target[:, 0], target[:, 3] - target[:, 1] + eps
    rho2 = ((target[:, 0] + target[:, 2] - pred[:, 0] - pred[:, 2]) ** 2
            + (target[:, 1] + target[:, 3] - pred[:, 1] - pred[:, 3]) ** 2) / 4
    v = (4 / math.pi ** 2) * (jnp.arctan(w2 / h2) - jnp.arctan(w1 / h1)) ** 2
    cious = ious - (rho2 / c2 + v ** 2 / (1 - ious + v))
    return 1 - cious


if __name__ == "__main__":
    key = jax.random.PRNGKey(0)
    k1, k2, k3, k4 = jax.random.split(key, 4)

    n = 200  # number of boxes (deliberately not a multiple of 128)

    # Build well-formed (x1, y1, x2, y2) boxes.
    p_xy = jax.random.uniform(k1, (n, 2), jnp.float32, 0.0, 10.0)
    p_wh = jax.random.uniform(k2, (n, 2), jnp.float32, 0.5, 5.0)
    pred = jnp.concatenate([p_xy, p_xy + p_wh], axis=1)      # (n, 4)

    t_xy = jax.random.uniform(k3, (n, 2), jnp.float32, 0.0, 10.0)
    t_wh = jax.random.uniform(k4, (n, 2), jnp.float32, 0.5, 5.0)
    target = jnp.concatenate([t_xy, t_xy + t_wh], axis=1)    # (n, 4)

    # MyCIoULoss(eps=1e-6, reduction='mean', loss_weight=1.0)(pred, target)
    loss = my_ciou_loss(pred, target, eps=1e-6, reduction='mean',
                        loss_weight=1.0)
    loss = jax.block_until_ready(loss)

    # Light sanity check vs pure-JAX reference (kernel uses a minimax f32 atan
    # and approximate reciprocals for non-critical divides; tolerance generous).
    ref = float(jnp.mean(_ciou_ref(pred, target, eps=1e-6)))
    assert abs(float(loss) - ref) < 1e-3, (float(loss), ref)

    print("KERNEL_OK")
</pallas_src>

<mosaic_0001>
module attributes {stable_mosaic.version = 11 : i64} {
  func.func @_ciou_kernel(%arg0: i32, %arg1: memref<4x2x128xf32, #tpu.memory_space<vmem>>, %arg2: memref<4x2x128xf32, #tpu.memory_space<vmem>>, %arg3: memref<2x128xf32, #tpu.memory_space<vmem>>) attributes {dimension_semantics = [#tpu.dimension_semantics<parallel>], iteration_bounds = array<i64: 1>, scalar_prefetch = 0 : i64, scratch_operands = 0 : i64, tpu.core_type = #tpu.core_type<tc>, window_params = [{transform_indices = @transform_0, window_bounds = array<i64: 4, 2, 128>}, {transform_indices = @transform_1, window_bounds = array<i64: 4, 2, 128>}, {transform_indices = @transform_2, window_bounds = array<i64: 2, 128>}]} {
    %c0 = arith.constant 0 : index
    %c0_0 = arith.constant 0 : index
    %c0_1 = arith.constant 0 : index
    %0 = vector.load %arg1[%c0, %c0_0, %c0_1] : memref<4x2x128xf32, #tpu.memory_space<vmem>>, vector<1x2x128xf32>
    %1 = vector.shape_cast %0 : vector<1x2x128xf32> to vector<2x128xf32>
    %c1 = arith.constant 1 : index
    %c0_2 = arith.constant 0 : index
    %c0_3 = arith.constant 0 : index
    %2 = vector.load %arg1[%c1, %c0_2, %c0_3] : memref<4x2x128xf32, #tpu.memory_space<vmem>>, vector<1x2x128xf32>
    %3 = vector.shape_cast %2 : vector<1x2x128xf32> to vector<2x128xf32>
    %c2 = arith.constant 2 : index
    %c0_4 = arith.constant 0 : index
    %c0_5 = arith.constant 0 : index
    %4 = vector.load %arg1[%c2, %c0_4, %c0_5] : memref<4x2x128xf32, #tpu.memory_space<vmem>>, vector<1x2x128xf32>
    %5 = vector.shape_cast %4 : vector<1x2x128xf32> to vector<2x128xf32>
    %c3 = arith.constant 3 : index
    %c0_6 = arith.constant 0 : index
    %c0_7 = arith.constant 0 : index
    %6 = vector.load %arg1[%c3, %c0_6, %c0_7] : memref<4x2x128xf32, #tpu.memory_space<vmem>>, vector<1x2x128xf32>
    %7 = vector.shape_cast %6 : vector<1x2x128xf32> to vector<2x128xf32>
    %c0_8 = arith.constant 0 : index
    %c0_9 = arith.constant 0 : index
    %c0_10 = arith.constant 0 : index
    %8 = vector.load %arg2[%c0_8, %c0_9, %c0_10] : memref<4x2x128xf32, #tpu.memory_space<vmem>>, vector<1x2x128xf32>
    %9 = vector.shape_cast %8 : vector<1x2x128xf32> to vector<2x128xf32>
    %c1_11 = arith.constant 1 : index
    %c0_12 = arith.constant 0 : index
    %c0_13 = arith.constant 0 : index
    %10 = vector.load %arg2[%c1_11, %c0_12, %c0_13] : memref<4x2x128xf32, #tpu.memory_space<vmem>>, vector<1x2x128xf32>
    %11 = vector.shape_cast %10 : vector<1x2x128xf32> to vector<2x128xf32>
    %c2_14 = arith.constant 2 : index
    %c0_15 = arith.constant 0 : index
    %c0_16 = arith.constant 0 : index
    %12 = vector.load %arg2[%c2_14, %c0_15, %c0_16] : memref<4x2x128xf32, #tpu.memory_space<vmem>>, vector<1x2x128xf32>
    %13 = vector.shape_cast %12 : vector<1x2x128xf32> to vector<2x128xf32>
    %c3_17 = arith.constant 3 : index
    %c0_18 = arith.constant 0 : index
    %c0_19 = arith.constant 0 : index
    %14 = vector.load %arg2[%c3_17, %c0_18, %c0_19] : memref<4x2x128xf32, #tpu.memory_space<vmem>>, vector<1x2x128xf32>
    %15 = vector.shape_cast %14 : vector<1x2x128xf32> to vector<2x128xf32>
    %16 = arith.minimumf %5, %13 : vector<2x128xf32>
    %17 = arith.maximumf %1, %9 : vector<2x128xf32>
    %18 = arith.subf %16, %17 : vector<2x128xf32>
    %cst = arith.constant 0.000000e+00 : f32
    %19 = vector.broadcast %cst : f32 to vector<2x128xf32>
    %20 = arith.maximumf %18, %19 : vector<2x128xf32>
    %21 = arith.minimumf %7, %15 : vector<2x128xf32>
    %22 = arith.maximumf %3, %11 : vector<2x128xf32>
    %23 = arith.subf %21, %22 : vector<2x128xf32>
    %cst_20 = arith.constant 0.000000e+00 : f32
    %24 = vector.broadcast %cst_20 : f32 to vector<2x128xf32>
    %25 = arith.maximumf %23, %24 : vector<2x128xf32>
    %26 = arith.mulf %20, %25 : vector<2x128xf32>
    %27 = arith.subf %5, %1 : vector<2x128xf32>
    %28 = arith.subf %7, %3 : vector<2x128xf32>
    %29 = arith.subf %13, %9 : vector<2x128xf32>
    %30 = arith.subf %15, %11 : vector<2x128xf32>
    %31 = arith.mulf %27, %28 : vector<2x128xf32>
    %32 = arith.mulf %29, %30 : vector<2x128xf32>
    %33 = arith.addf %31, %32 : vector<2x128xf32>
    %34 = arith.subf %33, %26 : vector<2x128xf32>
    %cst_21 = arith.constant 9.99999997E-7 : f32
    %35 = vector.broadcast %cst_21 : f32 to vector<2x128xf32>
    %36 = arith.addf %34, %35 : vector<2x128xf32>
    %37 = arith.divf %26, %36 : vector<2x128xf32>
    %38 = arith.maximumf %5, %13 : vector<2x128xf32>
    %39 = arith.minimumf %1, %9 : vector<2x128xf32>
    %40 = arith.subf %38, %39 : vector<2x128xf32>
    %cst_22 = arith.constant 0.000000e+00 : f32
    %41 = vector.broadcast %cst_22 : f32 to vector<2x128xf32>
    %42 = arith.maximumf %40, %41 : vector<2x128xf32>
    %43 = arith.maximumf %7, %15 : vector<2x128xf32>
    %44 = arith.minimumf %3, %11 : vector<2x128xf32>
    %45 = arith.subf %43, %44 : vector<2x128xf32>
    %cst_23 = arith.constant 0.000000e+00 : f32
    %46 = vector.broadcast %cst_23 : f32 to vector<2x128xf32>
    %47 = arith.maximumf %45, %46 : vector<2x128xf32>
    %48 = arith.mulf %42, %42 : vector<2x128xf32>
    %49 = arith.mulf %47, %47 : vector<2x128xf32>
    %50 = arith.addf %48, %49 : vector<2x128xf32>
    %cst_24 = arith.constant 9.99999997E-7 : f32
    %51 = vector.broadcast %cst_24 : f32 to vector<2x128xf32>
    %52 = arith.addf %50, %51 : vector<2x128xf32>
    %53 = arith.addf %9, %13 : vector<2x128xf32>
    %54 = arith.addf %1, %5 : vector<2x128xf32>
    %55 = arith.subf %53, %54 : vector<2x128xf32>
    %56 = arith.addf %11, %15 : vector<2x128xf32>
    %57 = arith.addf %3, %7 : vector<2x128xf32>
    %58 = arith.subf %56, %57 : vector<2x128xf32>
    %59 = arith.mulf %55, %55 : vector<2x128xf32>
    %60 = arith.mulf %58, %58 : vector<2x128xf32>
    %61 = arith.addf %59, %60 : vector<2x128xf32>
    %cst_25 = arith.constant 2.500000e-01 : f32
    %62 = vector.broadcast %cst_25 : f32 to vector<2x128xf32>
    %63 = arith.mulf %62, %61 : vector<2x128xf32>
    %cst_26 = arith.constant 9.99999997E-7 : f32
    %64 = vector.broadcast %cst_26 : f32 to vector<2x128xf32>
    %65 = arith.addf %28, %64 : vector<2x128xf32>
    %cst_27 = arith.constant 9.99999997E-7 : f32
    %66 = vector.broadcast %cst_27 : f32 to vector<2x128xf32>
    %67 = arith.addf %30, %66 : vector<2x128xf32>
    %68 = arith.mulf %29, %65 : vector<2x128xf32>
    %69 = arith.mulf %27, %67 : vector<2x128xf32>
    %70 = arith.subf %68, %69 : vector<2x128xf32>
    %71 = arith.mulf %65, %67 : vector<2x128xf32>
    %72 = arith.mulf %27, %29 : vector<2x128xf32>
    %73 = arith.addf %71, %72 : vector<2x128xf32>
    %74 = tpu.reciprocal %73 {approx = true} : vector<2x128xf32> -> vector<2x128xf32>
    %75 = arith.mulf %70, %74 : vector<2x128xf32>
    %76 = math.absf %75 : vector<2x128xf32>
    %cst_28 = arith.constant 2.41421366 : f32
    %77 = vector.broadcast %cst_28 : f32 to vector<2x128xf32>
    %78 = arith.cmpf ogt, %76, %77 : vector<2x128xf32>
    %cst_29 = arith.constant 0.414213568 : f32
    %79 = vector.broadcast %cst_29 : f32 to vector<2x128xf32>
    %80 = arith.cmpf ogt, %76, %79 : vector<2x128xf32>
    %cst_30 = arith.constant dense<true> : vector<2x128xi1>
    %81 = arith.xori %78, %cst_30 : vector<2x128xi1>
    %82 = arith.andi %80, %81 : vector<2x128xi1>
    %cst_31 = arith.constant 1.000000e-30 : f32
    %83 = vector.broadcast %cst_31 : f32 to vector<2x128xf32>
    %84 = arith.maximumf %76, %83 : vector<2x128xf32>
    %cst_32 = arith.constant -1.000000e+00 : f32
    %85 = vector.broadcast %cst_32 : f32 to vector<2x128xf32>
    %86 = arith.divf %85, %84 : vector<2x128xf32>
    %cst_33 = arith.constant 1.000000e+00 : f32
    %87 = vector.broadcast %cst_33 : f32 to vector<2x128xf32>
    %88 = arith.subf %76, %87 : vector<2x128xf32>
    %cst_34 = arith.constant 1.000000e+00 : f32
    %89 = vector.broadcast %cst_34 : f32 to vector<2x128xf32>
    %90 = arith.addf %76, %89 : vector<2x128xf32>
    %91 = arith.divf %88, %90 : vector<2x128xf32>
    %92 = arith.select %82, %91, %76 : vector<2x128xi1>, vector<2x128xf32>
    %93 = arith.select %78, %86, %92 : vector<2x128xi1>, vector<2x128xf32>
    %cst_35 = arith.constant 0.785398185 : f32
    %cst_36 = arith.constant 0.000000e+00 : f32
    %94 = vector.broadcast %cst_35 : f32 to vector<2x128xf32>
    %95 = vector.broadcast %cst_36 : f32 to vector<2x128xf32>
    %96 = arith.select %82, %94, %95 : vector<2x128xi1>, vector<2x128xf32>
    %cst_37 = arith.constant 1.57079637 : f32
    %97 = vector.broadcast %cst_37 : f32 to vector<2x128xf32>
    %98 = arith.select %78, %97, %96 : vector<2x128xi1>, vector<2x128xf32>
    %99 = arith.mulf %93, %93 : vector<2x128xf32>
    %cst_38 = arith.constant 0.0805374458 : f32
    %100 = vector.broadcast %cst_38 : f32 to vector<2x128xf32>
    %101 = arith.mulf %100, %99 : vector<2x128xf32>
    %cst_39 = arith.constant 0.138776854 : f32
    %102 = vector.broadcast %cst_39 : f32 to vector<2x128xf32>
    %103 = arith.subf %101, %102 : vector<2x128xf32>
    %104 = arith.mulf %103, %99 : vector<2x128xf32>
    %cst_40 = arith.constant 0.199777111 : f32
    %105 = vector.broadcast %cst_40 : f32 to vector<2x128xf32>
    %106 = arith.addf %104, %105 : vector<2x128xf32>
    %107 = arith.mulf %106, %99 : vector<2x128xf32>
    %cst_41 = arith.constant 0.333329499 : f32
    %108 = vector.broadcast %cst_41 : f32 to vector<2x128xf32>
    %109 = arith.subf %107, %108 : vector<2x128xf32>
    %110 = arith.mulf %109, %99 : vector<2x128xf32>
    %111 = arith.mulf %110, %93 : vector<2x128xf32>
    %112 = arith.addf %111, %93 : vector<2x128xf32>
    %113 = arith.addf %98, %112 : vector<2x128xf32>
    %cst_42 = arith.constant 0.000000e+00 : f32
    %114 = vector.broadcast %cst_42 : f32 to vector<2x128xf32>
    %115 = arith.cmpf olt, %75, %114 : vector<2x128xf32>
    %cst_43 = arith.constant 0.000000e+00 : f32
    %116 = vector.broadcast %cst_43 : f32 to vector<2x128xf32>
    %117 = arith.subf %116, %113 : vector<2x128xf32>
    %118 = arith.select %115, %117, %113 : vector<2x128xi1>, vector<2x128xf32>
    %cst_44 = arith.constant 0.405284733 : f32
    %119 = vector.broadcast %cst_44 : f32 to vector<2x128xf32>
    %120 = arith.mulf %119, %118 : vector<2x128xf32>
    %121 = arith.mulf %120, %118 : vector<2x128xf32>
    %122 = tpu.reciprocal %52 {approx = true} : vector<2x128xf32> -> vector<2x128xf32>
    %123 = arith.mulf %63, %122 : vector<2x128xf32>
    %124 = arith.mulf %121, %121 : vector<2x128xf32>
    %cst_45 = arith.constant 1.000000e+00 : f32
    %125 = vector.broadcast %cst_45 : f32 to vector<2x128xf32>
    %126 = arith.subf %125, %37 : vector<2x128xf32>
    %127 = arith.addf %126, %121 : vector<2x128xf32>
    %128 = tpu.reciprocal %127 {approx = true} : vector<2x128xf32> -> vector<2x128xf32>
    %129 = arith.mulf %124, %128 : vector<2x128xf32>
    %130 = arith.addf %123, %129 : vector<2x128xf32>
    %131 = arith.subf %37, %130 : vector<2x128xf32>
    %cst_46 = arith.constant 1.000000e+00 : f32
    %132 = vector.broadcast %cst_46 : f32 to vector<2x128xf32>
    %133 = arith.subf %132, %131 : vector<2x128xf32>
    %c0_47 = arith.constant 0 : index
    %c0_48 = arith.constant 0 : index
    %134 = vector.load %arg3[%c0_47, %c0_48] : memref<2x128xf32, #tpu.memory_space<vmem>>, vector<2x128xf32>
    tpu.vector_store %arg3[%c0_47, %c0_48], %133 {strides = array<i32>} : memref<2x128xf32, #tpu.memory_space<vmem>>, vector<2x128xf32>,
    return
  }
  func.func @transform_0(%arg0: i32) -> (i32, i32, i32) {
    %c0_i32 = arith.constant 0 : i32
    %c0_i32_0 = arith.constant 0 : i32
    %c0_i32_1 = arith.constant 0 : i32
    return %c0_i32, %arg0, %c0_i32_0 : i32, i32, i32
  }
  func.func @transform_1(%arg0: i32) -> (i32, i32, i32) {
    %c0_i32 = arith.constant 0 : i32
    %c0_i32_0 = arith.constant 0 : i32
    %c0_i32_1 = arith.constant 0 : i32
    return %c0_i32, %arg0, %c0_i32_0 : i32, i32, i32
  }
  func.func @transform_2(%arg0: i32) -> (i32, i32) {
    %c0_i32 = arith.constant 0 : i32
    %c0_i32_0 = arith.constant 0 : i32
    return %arg0, %c0_i32 : i32, i32
  }
}

</mosaic_0001>

<llo_original>
// kernel: tpu_custom_call.1
$region0: #{tpu_custom_call.1}
  #allocation0 [shape = 'u32[]', space=smem, size = 0x4, offset = 0x4, fixed_abs, tag = 'smem constant byte address 0x4 - core index']
  #allocation1 [shape = 'u32[144,128]{1,0:T(1,128)}', space=vmem, size = 0x12000, scoped, tag = 'internal scratch']
  %s0 = inlined_call_operand.hbm [shape: f32[4,2,128], index: 0, kind: input, shape index: {}]
  %s1 = inlined_call_operand.hbm [shape: f32[4,2,128], index: 1, kind: input, shape index: {}]
  %s2 = inlined_call_operand.hbm [shape: f32[2,128], index: 2, kind: output, shape index: {}]
  %s3 = sld [smem:[#allocation0]]
  $region26: #{tpu_custom_call.1} parent=0
    _
  %s5 = ssub.s32 1, %s3
  %s6 = scalar_select 0, %s5, %s3
  $region1: #{tpu_custom_call.1} parent=0
    #allocation2 [shape = 'u8[4096]{0}', space=vmem, size = 0x1000, scoped, tag = 'input window, operand 0, single buffered']
    #allocation3 [shape = 's32[1]{0}', space=sflag, size = 0x4, scoped, tag = 'scoped memory for tpu_custom_call.1']
    #allocation4 [shape = 's32[1]{0}', space=sflag, size = 0x4, scoped, tag = 'scoped memory for tpu_custom_call.1']
    #allocation5 [shape = 'u8[4096]{0}', space=vmem, size = 0x1000, scoped, tag = 'input window, operand 1, single buffered']
    #allocation6 [shape = 's32[1]{0}', space=sflag, size = 0x4, scoped, tag = 'scoped memory for tpu_custom_call.1']
    #allocation7 [shape = 'u8[1024]{0}', space=vmem, size = 0x400, scoped, tag = 'output window, operand 0, single buffered']
    %7 = vsyncpa [#allocation3], 0
    %8 = vsyncpa [#allocation6], 0
    %9 = vsyncpa [#allocation4], 0
    // Predicated region
    $region2: #{tpu_custom_call.1} parent=1 // pred_check
      _
    $region3: #{tpu_custom_call.1} parent=1 // pred_check_branch
      %11 = sbr.rel (0) target = $region5
    $region4: #{tpu_custom_call.1} parent=1 // pred_region
      %s13 = ssub.s32 128, 128
      %14 = vsyncadd [#allocation3], %s13
      %s15 = sshll.u32 [#allocation2], 4
      %s16 = int_to_ptr.vmem [resolvable:$true] %s15
      %21 = dma.hbm_to_vmem [thread:$0]  %s0, 128, %s16, [#allocation3], 32, 32, 2
    $region5: #{tpu_custom_call.1} parent=1 // pred_fallthru
      _
    // Predicated region
    $region6: #{tpu_custom_call.1} parent=1 // pred_check
      _
    $region7: #{tpu_custom_call.1} parent=1 // pred_check_branch
      %23 = sbr.rel (0) target = $region9
    $region8: #{tpu_custom_call.1} parent=1 // pred_region
      %s25 = ssub.s32 128, 128
      %26 = vsyncadd [#allocation6], %s25
      %s27 = sshll.u32 [#allocation5], 4
      %s28 = int_to_ptr.vmem [resolvable:$true] %s27
      %33 = dma.hbm_to_vmem [thread:$0]  %s1, 128, %s28, [#allocation6], 32, 32, 2
    $region9: #{tpu_custom_call.1} parent=1 // pred_fallthru
      _
    // Predicated region
    $region10: #{tpu_custom_call.1} parent=1 // pred_check
      _
    $region11: #{tpu_custom_call.1} parent=1 // pred_check_branch
      %35 = sbr.rel (0) target = $region13
    $region12: #{tpu_custom_call.1} parent=1 // pred_region
      %36 = dma.done [#allocation3], 128
    $region13: #{tpu_custom_call.1} parent=1 // pred_fallthru
      _
    // Predicated region
    $region14: #{tpu_custom_call.1} parent=1 // pred_check
      _
    $region15: #{tpu_custom_call.1} parent=1 // pred_check_branch
      %38 = sbr.rel (0) target = $region17
    $region16: #{tpu_custom_call.1} parent=1 // pred_region
      %39 = dma.done [#allocation6], 128
    $region17: #{tpu_custom_call.1} parent=1 // pred_fallthru
      _
    %v40 = vld [vmem:[#allocation2] sm:$0x3]
    %s41 = scalar_lea.vmem [#allocation2], 2
    %v42 = vld [vmem:[%s41] sm:$0x3]
    %s43 = scalar_lea.vmem [#allocation2], 4
    %v44 = vld [vmem:[%s43] sm:$0x3]
    %s45 = scalar_lea.vmem [#allocation2], 6
    %v46 = vld [vmem:[%s45] sm:$0x3]
    %v47 = vld [vmem:[#allocation5] sm:$0x3]
    %s48 = scalar_lea.vmem [#allocation5], 2
    %v49 = vld [vmem:[%s48] sm:$0x3]
    %s50 = scalar_lea.vmem [#allocation5], 4
    %v51 = vld [vmem:[%s50] sm:$0x3]
    %s52 = scalar_lea.vmem [#allocation5], 6
    %v53 = vld [vmem:[%s52] sm:$0x3]
    %v54 = vmin.f32 %v44, %v51
    %v55 = vmax.f32 %v40, %v47
    %v56 = vsub.f32 %v54, %v55
    %v57 = vmax.f32 %v56, 0.0
    %v58 = vmin.f32 %v46, %v53
    %v59 = vmax.f32 %v42, %v49
    %v60 = vsub.f32 %v58, %v59
    %v61 = vmax.f32 %v60, 0.0
    %v62 = vmul.f32 %v57, %v61
    %v63 = vsub.f32 %v44, %v40
    %v64 = vsub.f32 %v46, %v42
    %v65 = vsub.f32 %v51, %v47
    %v66 = vsub.f32 %v53, %v49
    %v67 = vmul.f32 %v63, %v64
    %v68 = vmul.f32 %v65, %v66
    %v69 = vadd.f32 %v67, %v68
    %v70 = vsub.f32 %v69, %v62
    %v71 = vadd.f32 %v70, 1e-06
    %v72 = vrcp.pop %v71
    %v73 = vmul.f32 %v62, %v72
    %v74 = vmax.f32 %v44, %v51
    %v75 = vmin.f32 %v40, %v47
    %v76 = vsub.f32 %v74, %v75
    %v77 = vmax.f32 %v76, 0.0
    %v78 = vmax.f32 %v46, %v53
    %v79 = vmin.f32 %v42, %v49
    %v80 = vsub.f32 %v78, %v79
    %v81 = vmax.f32 %v80, 0.0
    %v82 = vmul.f32 %v77, %v77
    %v83 = vmul.f32 %v81, %v81
    %v84 = vadd.f32 %v82, %v83
    %v85 = vadd.f32 %v84, 1e-06
    %v86 = vadd.f32 %v47, %v51
    %v87 = vadd.f32 %v40, %v44
    %v88 = vsub.f32 %v86, %v87
    %v89 = vadd.f32 %v49, %v53
    %v90 = vadd.f32 %v42, %v46
    %v91 = vsub.f32 %v89, %v90
    %v92 = vmul.f32 %v88, %v88
    %v93 = vmul.f32 %v91, %v91
    %v94 = vadd.f32 %v92, %v93
    %v95 = vmul.f32 %v94, 0.25
    %v96 = vadd.f32 %v64, 1e-06
    %v97 = vadd.f32 %v66, 1e-06
    %v98 = vmul.f32 %v65, %v96
    %v99 = vmul.f32 %v63, %v97
    %v100 = vsub.f32 %v98, %v99
    %v101 = vmul.f32 %v96, %v97
    %v102 = vmul.f32 %v63, %v65
    %v103 = vadd.f32 %v101, %v102
    %v104 = vrcp.pop %v103
    %v105 = vmul.f32 %v100, %v104
    %v106 = vand.u32 2147483647, %v105
    %vm107 = vcmp.gt.f32.partialorder %v106, 2.4142137
    %vm108 = vcmp.gt.f32.partialorder %v106, 0.41421357
    %vm109 = vmxor %vm107, 1
    %vm110 = vmand %vm108, %vm109
    %v111 = vmax.f32 %v106, 1e-30
    %v112 = vrcp.pop %v111
    %v113 = vmul.f32 -1.0, %v112
    %v114 = vsub.f32 %v106, 1.0
    %v115 = vadd.f32 %v106, 1.0
    %v116 = vrcp.pop %v115
    %v117 = vmul.f32 %v114, %v116
    %v118 = vsel %vm110, %v117, %v106
    %v119 = vsel %vm107, %v113, %v118
    %v120 = vsel %vm110, 0.7853982, 0.0
    %v121 = vsel %vm107, 1.5707964, %v120
    %v122 = vmul.f32 %v119, %v119
    %v123 = vmul.f32 %v122, 0.080537446
    %v124 = vsub.f32 %v123, 0.13877685
    %v125 = vmul.f32 %v124, %v122
    %v126 = vadd.f32 %v125, 0.19977711
    %v127 = vmul.f32 %v126, %v122
    %v128 = vsub.f32 %v127, 0.3333295
    %v129 = vmul.f32 %v128, %v122
    %v130 = vmul.f32 %v129, %v119
    %v131 = vadd.f32 %v130, %v119
    %v132 = vadd.f32 %v121, %v131
    %vm133 = vcmp.lt.f32.partialorder %v105, 0.0
    %v134 = vsub.f32 0.0, %v132
    %v135 = vsel %vm133, %v134, %v132
    %v136 = vmul.f32 %v135, 0.40528473
    %v137 = vmul.f32 %v136, %v135
    %v138 = vrcp.pop %v85
    %v139 = vmul.f32 %v95, %v138
    %v140 = vmul.f32 %v137, %v137
    %v141 = vsub.f32 1.0, %v73
    %v142 = vadd.f32 %v141, %v137
    %v143 = vrcp.pop %v142
    %v144 = vmul.f32 %v140, %v143
    %v145 = vadd.f32 %v139, %v144
    %v146 = vsub.f32 %v73, %v145
    %v147 = vsub.f32 1.0, %v146
    %148 = vst [vmem:[#allocation7] sm:$0x3] %v147
    // Predicated region
    $region18: #{tpu_custom_call.1} parent=1 // pred_check
      _
    $region19: #{tpu_custom_call.1} parent=1 // pred_check_branch
      %150 = sbr.rel (0) target = $region21
    $region20: #{tpu_custom_call.1} parent=1 // pred_region
      %s152 = ssub.s32 32, 32
      %153 = vsyncadd [#allocation4], %s152
      %s155 = sshll.u32 [#allocation7], 4
      %s156 = int_to_ptr.vmem [resolvable:$true] %s155
      %158 = dma.vmem_to_hbm [thread:$0]  %s156, 32, %s2, [#allocation4]
    $region21: #{tpu_custom_call.1} parent=1 // pred_fallthru
      _
    // Predicated region
    $region22: #{tpu_custom_call.1} parent=1 // pred_check
      _
    $region23: #{tpu_custom_call.1} parent=1 // pred_check_branch
      %160 = sbr.rel (0) target = $region25
    $region24: #{tpu_custom_call.1} parent=1 // pred_region
      %161 = dma.done [#allocation4], 32
    $region25: #{tpu_custom_call.1} parent=1 // pred_fallthru
      _
    %162 = vsyncpa [#allocation3], 1
    %163 = vsyncpa [#allocation6], 1
    %164 = vsyncpa [#allocation4], 1

</llo_original>
